<compile_context>
chip_gen: v7x
topology: tpu7x:2x2x1
jax: 0.10.0
libtpu: 0.0.40
codegen_flags: <defaults>
</compile_context>

<pallas_src>
import numpy as np
import jax
import jax.numpy as jnp
from jax import lax
from jax.experimental import pallas as pl
from jax.experimental.pallas import tpu as pltpu


# ----------------------------- Pallas kernel ------------------------------

def gau_kernel(gp_ref, w1t_ref, sh_ref, bh_ref,
               lowc_ref, w3f_ref, sl_ref, bl_ref,
               highc_ref, wup_ref, su_ref, bu_ref,
               out_ref):
    # gp_ref   : (1, Ch)          global-avg-pooled high features (this batch)
    # w1t_ref  : (Cl, Ch)         1x1 conv weight (transposed)
    # sh/bh    : (Cl, 1)          folded bn_high affine
    # lowc_ref : (9*Cl, 4*H*W)    im2col'd low features, phase-ordered columns
    # w3f_ref  : (Cl, 9*Cl)       3x3 conv weight flattened over taps
    # sl/bl    : (Cl, 1)          folded bn_low affine
    # highc_ref: (4, 4*Ch, H*W)   per-phase polyphase columns of high features
    # wup_ref  : (4, Cl, 4*Ch)    per-phase transposed-conv weights
    # su/bu    : (Cl, 1)          folded bn_upsample affine
    # out_ref  : (Cl, 4*H*W)      phase-ordered, lane-dense output tile

    # --- gate: GAP -> conv1x1 -> bn_high -> ReLU (as a column vector) ---
    g = jnp.sum(w1t_ref[...] * gp_ref[...], axis=1, keepdims=True)     # (Cl, 1)
    gate = jnp.maximum(g * sh_ref[...] + bh_ref[...], 0.0)

    # --- low path: 3x3 conv = one matmul over all 9 taps & 4 phases ---
    att = jnp.dot(w3f_ref[...], lowc_ref[...],
                  preferred_element_type=jnp.float32)                  # (Cl, 4HW)
    att = (att * sl_ref[...] + bl_ref[...]) * gate

    # --- high path: polyphase ConvTranspose(4,2,1): one matmul per phase ---
    ups = [jnp.dot(wup_ref[p], highc_ref[p],
                   preferred_element_type=jnp.float32)                 # (Cl, HW)
           for p in range(4)]
    up = jnp.concatenate(ups, axis=-1)                                 # (Cl, 4HW)
    up = up * su_ref[...] + bu_ref[...]

    out_ref[...] = jnp.maximum(up + att, 0.0)


# ------------------------------ JAX wrapper -------------------------------

def fold_bn(gamma, beta, mean, var, eps=1e-5):
    scale = gamma / jnp.sqrt(var + eps)
    shift = beta - mean * scale
    return (scale.reshape(-1, 1).astype(jnp.float32),
            shift.reshape(-1, 1).astype(jnp.float32))


# 1-D polyphase table for ConvTranspose(k=4, s=2, p=1):
# output row 2m+ph reads padded input row (m+dh) with kernel row kh,
# for (dh, kh) in OFFS_TAPS[ph].
_OFFS_TAPS = {0: ((0, 3), (1, 1)), 1: ((1, 2), (2, 0))}


def ex_gau_forward(fms_high, fms_low, params):
    """fms_high: (B, Ch, H, W); fms_low: (B, Cl, 2H, 2W). Returns NCHW."""
    B, Ch, H, W = fms_high.shape
    _, Cl, Hl, Wl = fms_low.shape
    assert Hl == 2 * H and Wl == 2 * W
    HW = H * W
    dtype = jnp.float32

    high = fms_high.astype(dtype)
    low = fms_low.astype(dtype)

    sh, bh = fold_bn(*params['bn_high'])
    sl, bl = fold_bn(*params['bn_low'])
    su, bu = fold_bn(*params['bn_up'])

    # gate inputs: global average pool (tiny XLA reduce) + 1x1 weight (Cl, Ch)
    gp = jnp.mean(high, axis=(2, 3))[:, None, :]                 # (B, 1, Ch)
    w1t = params['w1_pt'][:, :, 0, 0].astype(dtype)              # (Cl, Ch)

    # ---- low path im2col (phase-ordered columns) ----
    low_pad = jnp.pad(low, ((0, 0), (0, 0), (1, 1), (1, 1)))
    taps = [low_pad[:, :, kh:kh + Hl, kw:kw + Wl]
            for kh in range(3) for kw in range(3)]
    cols9 = jnp.concatenate(taps, axis=1)                        # (B, 9Cl, Hl, Wl)
    cols9 = cols9.reshape(B, 9 * Cl, H, 2, W, 2)                 # (.., m, ph, n, pw)
    low_cols = jnp.transpose(cols9, (0, 1, 3, 5, 2, 4)).reshape(B, 9 * Cl, 4 * HW)
    w3f = jnp.transpose(params['w3_pt'], (0, 2, 3, 1)).reshape(Cl, 9 * Cl).astype(dtype)

    # ---- high path: polyphase columns + per-phase weights ----
    high_pad = jnp.pad(high, ((0, 0), (0, 0), (1, 1), (1, 1)))   # (B, Ch, H+2, W+2)
    wup_pt = params['wup_pt'].astype(dtype)                      # (Ch, Cl, 4, 4)
    hc, wp = [], []
    for ph in range(2):
        for pw in range(2):
            slots, wblk = [], []
            for dh, kh in _OFFS_TAPS[ph]:
                for dw, kw in _OFFS_TAPS[pw]:
                    slots.append(high_pad[:, :, dh:dh + H, dw:dw + W])
                    wblk.append(wup_pt[:, :, kh, kw].T)          # (Cl, Ch)
            hc.append(jnp.concatenate(slots, axis=1).reshape(B, 4 * Ch, HW))
            wp.append(jnp.concatenate(wblk, axis=1))             # (Cl, 4*Ch)
    high_cols = jnp.stack(hc, axis=1)                            # (B, 4, 4Ch, HW)
    wup_ph = jnp.stack(wp, axis=0)                               # (4, Cl, 4Ch)

    out_flat = pl.pallas_call(
        gau_kernel,
        out_shape=jax.ShapeDtypeStruct((B, Cl, 4 * HW), jnp.float32),
        grid=(B,),
        in_specs=[
            pl.BlockSpec((None, 1, Ch), lambda b: (b, 0, 0)),            # gp
            pl.BlockSpec((Cl, Ch), lambda b: (0, 0)),                    # w1t
            pl.BlockSpec((Cl, 1), lambda b: (0, 0)),                     # sh
            pl.BlockSpec((Cl, 1), lambda b: (0, 0)),                     # bh
            pl.BlockSpec((None, 9 * Cl, 4 * HW), lambda b: (b, 0, 0)),   # low_cols
            pl.BlockSpec((Cl, 9 * Cl), lambda b: (0, 0)),                # w3f
            pl.BlockSpec((Cl, 1), lambda b: (0, 0)),                     # sl
            pl.BlockSpec((Cl, 1), lambda b: (0, 0)),                     # bl
            pl.BlockSpec((None, 4, 4 * Ch, HW), lambda b: (b, 0, 0, 0)), # high_cols
            pl.BlockSpec((4, Cl, 4 * Ch), lambda b: (0, 0, 0)),          # wup_ph
            pl.BlockSpec((Cl, 1), lambda b: (0, 0)),                     # su
            pl.BlockSpec((Cl, 1), lambda b: (0, 0)),                     # bu
        ],
        out_specs=pl.BlockSpec((None, Cl, 4 * HW), lambda b: (b, 0, 0)),
        compiler_params=pltpu.CompilerParams(dimension_semantics=("parallel",)),
    )(gp, w1t, sh, bh, low_cols, w3f, sl, bl, high_cols, wup_ph, su, bu)

    # de-interleave the 4 output phases: (B, Cl, ph, pw, m, n) -> NCHW
    out = out_flat.reshape(B, Cl, 2, 2, H, W)
    out = jnp.transpose(out, (0, 1, 4, 2, 5, 3)).reshape(B, Cl, Hl, Wl)
    return out


# ---------------------- pure-JAX reference (for check) --------------------

def _affine(x, scale, shift):
    return x * scale.reshape(1, -1, 1, 1) + shift.reshape(1, -1, 1, 1)


def reference_forward(fms_high, fms_low, params):
    dn = ('NCHW', 'OIHW', 'NCHW')
    sh, bh = fold_bn(*params['bn_high'])
    sl, bl = fold_bn(*params['bn_low'])
    su, bu = fold_bn(*params['bn_up'])

    gp = jnp.mean(fms_high, axis=(2, 3), keepdims=True)
    g = lax.conv_general_dilated(gp, params['w1_pt'], (1, 1), 'VALID',
                                 dimension_numbers=dn)
    g = jnp.maximum(_affine(g, sh, bh), 0.0)

    low_mask = lax.conv_general_dilated(fms_low, params['w3_pt'], (1, 1),
                                        ((1, 1), (1, 1)), dimension_numbers=dn)
    att = _affine(low_mask, sl, bl) * g

    w_t = jnp.flip(jnp.transpose(params['wup_pt'], (1, 0, 2, 3)), axis=(2, 3))
    up = lax.conv_general_dilated(fms_high, w_t, (1, 1), ((2, 2), (2, 2)),
                                  lhs_dilation=(2, 2), dimension_numbers=dn)
    up = _affine(up, su, bu)
    return jnp.maximum(up + att, 0.0)


# --------------------------------- params ----------------------------------

def init_params(key, channels_high, channels_low):
    ks = jax.random.split(key, 8)

    def bn(k):
        k1, k2, k3, k4 = jax.random.split(k, 4)
        gamma = jax.random.uniform(k1, (channels_low,), minval=0.5, maxval=1.5)
        beta = 0.1 * jax.random.normal(k2, (channels_low,))
        mean = 0.1 * jax.random.normal(k3, (channels_low,))
        var = jax.random.uniform(k4, (channels_low,), minval=0.5, maxval=1.5)
        return gamma, beta, mean, var

    params = dict(
        w1_pt=0.2 * jax.random.normal(ks[0], (channels_low, channels_high, 1, 1)),
        w3_pt=0.2 * jax.random.normal(ks[1], (channels_low, channels_low, 3, 3)),
        wup_pt=0.2 * jax.random.normal(ks[2], (channels_high, channels_low, 4, 4)),
        bn_high=bn(ks[3]), bn_low=bn(ks[4]), bn_up=bn(ks[5]),
    )
    return jax.tree_util.tree_map(lambda a: a.astype(jnp.float32), params)


# ----------------------------------- main -----------------------------------

if __name__ == "__main__":
    key = jax.random.PRNGKey(0)
    k_high, k_low, k_params = jax.random.split(key, 3)

    B, Ch, Cl, H, W = 2, 16, 8, 8, 8          # channels_high=16, channels_low=8
    Hl, Wl = 2 * H, 2 * W                     # low-level / upsampled spatial size

    fms_high = jax.random.normal(k_high, (B, Ch, H, W), jnp.float32)
    fms_low = jax.random.normal(k_low, (B, Cl, Hl, Wl), jnp.float32)
    params = init_params(k_params, Ch, Cl)

    out = ex_gau_forward(fms_high, fms_low, params)
    out = jax.block_until_ready(out)

    ref = reference_forward(fms_high, fms_low, params)
    np.testing.assert_allclose(np.asarray(out), np.asarray(ref), rtol=2e-2, atol=2e-2)

    print("KERNEL_OK")
</pallas_src>

<mosaic_0001>
module attributes {stable_mosaic.version = 11 : i64} {
  func.func @gau_kernel(%arg0: i32, %arg1: memref<1x1x16xf32, #tpu.memory_space<vmem>>, %arg2: memref<8x16xf32, #tpu.memory_space<vmem>>, %arg3: memref<8x1xf32, #tpu.memory_space<vmem>>, %arg4: memref<8x1xf32, #tpu.memory_space<vmem>>, %arg5: memref<1x72x256xf32, #tpu.memory_space<vmem>>, %arg6: memref<8x72xf32, #tpu.memory_space<vmem>>, %arg7: memref<8x1xf32, #tpu.memory_space<vmem>>, %arg8: memref<8x1xf32, #tpu.memory_space<vmem>>, %arg9: memref<1x4x64x64xf32, #tpu.memory_space<vmem>>, %arg10: memref<4x8x64xf32, #tpu.memory_space<vmem>>, %arg11: memref<8x1xf32, #tpu.memory_space<vmem>>, %arg12: memref<8x1xf32, #tpu.memory_space<vmem>>, %arg13: memref<1x8x256xf32, #tpu.memory_space<vmem>>) attributes {dimension_semantics = [#tpu.dimension_semantics<parallel>], iteration_bounds = array<i64: 2>, scalar_prefetch = 0 : i64, scratch_operands = 0 : i64, tpu.core_type = #tpu.core_type<tc>, window_params = [{transform_indices = @transform_0, window_bounds = array<i64: 1, 1, 16>}, {pipeline_mode = #tpu.pipeline_mode<synchronous>, transform_indices = @transform_1, window_bounds = array<i64: 8, 16>}, {pipeline_mode = #tpu.pipeline_mode<synchronous>, transform_indices = @transform_2, window_bounds = array<i64: 8, 1>}, {pipeline_mode = #tpu.pipeline_mode<synchronous>, transform_indices = @transform_3, window_bounds = array<i64: 8, 1>}, {transform_indices = @transform_4, window_bounds = array<i64: 1, 72, 256>}, {pipeline_mode = #tpu.pipeline_mode<synchronous>, transform_indices = @transform_5, window_bounds = array<i64: 8, 72>}, {pipeline_mode = #tpu.pipeline_mode<synchronous>, transform_indices = @transform_6, window_bounds = array<i64: 8, 1>}, {pipeline_mode = #tpu.pipeline_mode<synchronous>, transform_indices = @transform_7, window_bounds = array<i64: 8, 1>}, {transform_indices = @transform_8, window_bounds = array<i64: 1, 4, 64, 64>}, {pipeline_mode = #tpu.pipeline_mode<synchronous>, transform_indices = @transform_9, window_bounds = array<i64: 4, 8, 64>}, {pipeline_mode = #tpu.pipeline_mode<synchronous>, transform_indices = @transform_10, window_bounds = array<i64: 8, 1>}, {pipeline_mode = #tpu.pipeline_mode<synchronous>, transform_indices = @transform_11, window_bounds = array<i64: 8, 1>}, {transform_indices = @transform_12, window_bounds = array<i64: 1, 8, 256>}]} {
    %c0 = arith.constant 0 : index
    %c0_0 = arith.constant 0 : index
    %0 = vector.load %arg2[%c0, %c0_0] : memref<8x16xf32, #tpu.memory_space<vmem>>, vector<8x16xf32>
    %c0_1 = arith.constant 0 : index
    %c0_2 = arith.constant 0 : index
    %c0_3 = arith.constant 0 : index
    %1 = vector.load %arg1[%c0_1, %c0_2, %c0_3] : memref<1x1x16xf32, #tpu.memory_space<vmem>>, vector<1x1x16xf32>
    %2 = vector.shape_cast %1 : vector<1x1x16xf32> to vector<1x16xf32>
    %3 = vector.broadcast %2 : vector<1x16xf32> to vector<8x16xf32>
    %4 = arith.mulf %0, %3 : vector<8x16xf32>
    %cst = arith.constant dense<0.000000e+00> : vector<8xf32>
    %5 = vector.multi_reduction <add>, %4, %cst [1] : vector<8x16xf32> to vector<8xf32>
    %6 = vector.shape_cast %5 : vector<8xf32> to vector<8x1xf32>
    %c0_4 = arith.constant 0 : index
    %c0_5 = arith.constant 0 : index
    %7 = vector.load %arg3[%c0_4, %c0_5] : memref<8x1xf32, #tpu.memory_space<vmem>>, vector<8x1xf32>
    %8 = arith.mulf %6, %7 : vector<8x1xf32>
    %c0_6 = arith.constant 0 : index
    %c0_7 = arith.constant 0 : index
    %9 = vector.load %arg4[%c0_6, %c0_7] : memref<8x1xf32, #tpu.memory_space<vmem>>, vector<8x1xf32>
    %10 = arith.addf %8, %9 : vector<8x1xf32>
    %cst_8 = arith.constant 0.000000e+00 : f32
    %11 = vector.broadcast %cst_8 : f32 to vector<8x1xf32>
    %12 = arith.maximumf %10, %11 : vector<8x1xf32>
    %c0_9 = arith.constant 0 : index
    %c0_10 = arith.constant 0 : index
    %13 = vector.load %arg6[%c0_9, %c0_10] : memref<8x72xf32, #tpu.memory_space<vmem>>, vector<8x72xf32>
    %c0_11 = arith.constant 0 : index
    %c0_12 = arith.constant 0 : index
    %c0_13 = arith.constant 0 : index
    %14 = vector.load %arg5[%c0_11, %c0_12, %c0_13] : memref<1x72x256xf32, #tpu.memory_space<vmem>>, vector<1x72x256xf32>
    %15 = vector.shape_cast %14 : vector<1x72x256xf32> to vector<72x256xf32>
    %cst_14 = arith.constant dense<0.000000e+00> : vector<8x256xf32>
    %16 = tpu.matmul %13, %15, %cst_14 {dimension_numbers = #tpu.dot_dimension_numbers<[1], [0], [0], [1], [0, 0, 1, 1], [], []>} : vector<8x72xf32>, vector<72x256xf32>, vector<8x256xf32> -> vector<8x256xf32>
    %c0_15 = arith.constant 0 : index
    %c0_16 = arith.constant 0 : index
    %17 = vector.load %arg7[%c0_15, %c0_16] : memref<8x1xf32, #tpu.memory_space<vmem>>, vector<8x1xf32>
    %18 = vector.broadcast %17 : vector<8x1xf32> to vector<8x256xf32>
    %19 = arith.mulf %16, %18 : vector<8x256xf32>
    %c0_17 = arith.constant 0 : index
    %c0_18 = arith.constant 0 : index
    %20 = vector.load %arg8[%c0_17, %c0_18] : memref<8x1xf32, #tpu.memory_space<vmem>>, vector<8x1xf32>
    %21 = vector.broadcast %20 : vector<8x1xf32> to vector<8x256xf32>
    %22 = arith.addf %19, %21 : vector<8x256xf32>
    %23 = vector.broadcast %12 : vector<8x1xf32> to vector<8x256xf32>
    %24 = arith.mulf %22, %23 : vector<8x256xf32>
    %c0_19 = arith.constant 0 : index
    %c0_20 = arith.constant 0 : index
    %c0_21 = arith.constant 0 : index
    %25 = vector.load %arg10[%c0_19, %c0_20, %c0_21] : memref<4x8x64xf32, #tpu.memory_space<vmem>>, vector<1x8x64xf32>
    %26 = vector.shape_cast %25 : vector<1x8x64xf32> to vector<8x64xf32>
    %c0_22 = arith.constant 0 : index
    %c0_23 = arith.constant 0 : index
    %c0_24 = arith.constant 0 : index
    %c0_25 = arith.constant 0 : index
    %27 = vector.load %arg9[%c0_22, %c0_23, %c0_24, %c0_25] : memref<1x4x64x64xf32, #tpu.memory_space<vmem>>, vector<1x1x64x64xf32>
    %28 = vector.shape_cast %27 : vector<1x1x64x64xf32> to vector<64x64xf32>
    %cst_26 = arith.constant dense<0.000000e+00> : vector<8x64xf32>
    %29 = tpu.matmul %26, %28, %cst_26 {dimension_numbers = #tpu.dot_dimension_numbers<[1], [0], [0], [1], [0, 0, 1, 1], [], []>} : vector<8x64xf32>, vector<64x64xf32>, vector<8x64xf32> -> vector<8x64xf32>
    %c1 = arith.constant 1 : index
    %c0_27 = arith.constant 0 : index
    %c0_28 = arith.constant 0 : index
    %30 = vector.load %arg10[%c1, %c0_27, %c0_28] : memref<4x8x64xf32, #tpu.memory_space<vmem>>, vector<1x8x64xf32>
    %31 = vector.shape_cast %30 : vector<1x8x64xf32> to vector<8x64xf32>
    %c0_29 = arith.constant 0 : index
    %c1_30 = arith.constant 1 : index
    %c0_31 = arith.constant 0 : index
    %c0_32 = arith.constant 0 : index
    %32 = vector.load %arg9[%c0_29, %c1_30, %c0_31, %c0_32] : memref<1x4x64x64xf32, #tpu.memory_space<vmem>>, vector<1x1x64x64xf32>
    %33 = vector.shape_cast %32 : vector<1x1x64x64xf32> to vector<64x64xf32>
    %cst_33 = arith.constant dense<0.000000e+00> : vector<8x64xf32>
    %34 = tpu.matmul %31, %33, %cst_33 {dimension_numbers = #tpu.dot_dimension_numbers<[1], [0], [0], [1], [0, 0, 1, 1], [], []>} : vector<8x64xf32>, vector<64x64xf32>, vector<8x64xf32> -> vector<8x64xf32>
    %c2 = arith.constant 2 : index
    %c0_34 = arith.constant 0 : index
    %c0_35 = arith.constant 0 : index
    %35 = vector.load %arg10[%c2, %c0_34, %c0_35] : memref<4x8x64xf32, #tpu.memory_space<vmem>>, vector<1x8x64xf32>
    %36 = vector.shape_cast %35 : vector<1x8x64xf32> to vector<8x64xf32>
    %c0_36 = arith.constant 0 : index
    %c2_37 = arith.constant 2 : index
    %c0_38 = arith.constant 0 : index
    %c0_39 = arith.constant 0 : index
    %37 = vector.load %arg9[%c0_36, %c2_37, %c0_38, %c0_39] : memref<1x4x64x64xf32, #tpu.memory_space<vmem>>, vector<1x1x64x64xf32>
    %38 = vector.shape_cast %37 : vector<1x1x64x64xf32> to vector<64x64xf32>
    %cst_40 = arith.constant dense<0.000000e+00> : vector<8x64xf32>
    %39 = tpu.matmul %36, %38, %cst_40 {dimension_numbers = #tpu.dot_dimension_numbers<[1], [0], [0], [1], [0, 0, 1, 1], [], []>} : vector<8x64xf32>, vector<64x64xf32>, vector<8x64xf32> -> vector<8x64xf32>
    %c3 = arith.constant 3 : index
    %c0_41 = arith.constant 0 : index
    %c0_42 = arith.constant 0 : index
    %40 = vector.load %arg10[%c3, %c0_41, %c0_42] : memref<4x8x64xf32, #tpu.memory_space<vmem>>, vector<1x8x64xf32>
    %41 = vector.shape_cast %40 : vector<1x8x64xf32> to vector<8x64xf32>
    %c0_43 = arith.constant 0 : index
    %c3_44 = arith.constant 3 : index
    %c0_45 = arith.constant 0 : index
    %c0_46 = arith.constant 0 : index
    %42 = vector.load %arg9[%c0_43, %c3_44, %c0_45, %c0_46] : memref<1x4x64x64xf32, #tpu.memory_space<vmem>>, vector<1x1x64x64xf32>
    %43 = vector.shape_cast %42 : vector<1x1x64x64xf32> to vector<64x64xf32>
    %cst_47 = arith.constant dense<0.000000e+00> : vector<8x64xf32>
    %44 = tpu.matmul %41, %43, %cst_47 {dimension_numbers = #tpu.dot_dimension_numbers<[1], [0], [0], [1], [0, 0, 1, 1], [], []>} : vector<8x64xf32>, vector<64x64xf32>, vector<8x64xf32> -> vector<8x64xf32>
    %45 = tpu.concatenate %29, %34, %39, %44 in 1 : vector<8x64xf32>, vector<8x64xf32>, vector<8x64xf32>, vector<8x64xf32> -> vector<8x256xf32>
    %c0_48 = arith.constant 0 : index
    %c0_49 = arith.constant 0 : index
    %46 = vector.load %arg11[%c0_48, %c0_49] : memref<8x1xf32, #tpu.memory_space<vmem>>, vector<8x1xf32>
    %47 = vector.broadcast %46 : vector<8x1xf32> to vector<8x256xf32>
    %48 = arith.mulf %45, %47 : vector<8x256xf32>
    %c0_50 = arith.constant 0 : index
    %c0_51 = arith.constant 0 : index
    %49 = vector.load %arg12[%c0_50, %c0_51] : memref<8x1xf32, #tpu.memory_space<vmem>>, vector<8x1xf32>
    %50 = vector.broadcast %49 : vector<8x1xf32> to vector<8x256xf32>
    %51 = arith.addf %48, %50 : vector<8x256xf32>
    %52 = arith.addf %51, %24 : vector<8x256xf32>
    %cst_52 = arith.constant 0.000000e+00 : f32
    %53 = vector.broadcast %cst_52 : f32 to vector<8x256xf32>
    %54 = arith.maximumf %52, %53 : vector<8x256xf32>
    %c0_53 = arith.constant 0 : index
    %c0_54 = arith.constant 0 : index
    %c0_55 = arith.constant 0 : index
    %55 = vector.load %arg13[%c0_53, %c0_54, %c0_55] : memref<1x8x256xf32, #tpu.memory_space<vmem>>, vector<1x8x256xf32>
    %56 = vector.shape_cast %55 : vector<1x8x256xf32> to vector<8x256xf32>
    %57 = vector.shape_cast %54 : vector<8x256xf32> to vector<1x8x256xf32>
    tpu.vector_store %arg13[%c0_53, %c0_54, %c0_55], %57 {strides = array<i32>} : memref<1x8x256xf32, #tpu.memory_space<vmem>>, vector<1x8x256xf32>,
    return
  }
  func.func @transform_0(%arg0: i32) -> (i32, i32, i32) {
    %c0_i32 = arith.constant 0 : i32
    %c0_i32_0 = arith.constant 0 : i32
    %c0_i32_1 = arith.constant 0 : i32
    return %arg0, %c0_i32, %c0_i32_0 : i32, i32, i32
  }
  func.func @transform_1(%arg0: i32) -> (i32, i32) {
    %c0_i32 = arith.constant 0 : i32
    %c0_i32_0 = arith.constant 0 : i32
    %c0_i32_1 = arith.constant 0 : i32
    return %c0_i32, %c0_i32_0 : i32, i32
  }
  func.func @transform_2(%arg0: i32) -> (i32, i32) {
    %c0_i32 = arith.constant 0 : i32
    %c0_i32_0 = arith.constant 0 : i32
    %c0_i32_1 = arith.constant 0 : i32
    return %c0_i32, %c0_i32_0 : i32, i32
  }
  func.func @transform_3(%arg0: i32) -> (i32, i32) {
    %c0_i32 = arith.constant 0 : i32
    %c0_i32_0 = arith.constant 0 : i32
    %c0_i32_1 = arith.constant 0 : i32
    return %c0_i32, %c0_i32_0 : i32, i32
  }
  func.func @transform_4(%arg0: i32) -> (i32, i32, i32) {
    %c0_i32 = arith.constant 0 : i32
    %c0_i32_0 = arith.constant 0 : i32
    %c0_i32_1 = arith.constant 0 : i32
    return %arg0, %c0_i32, %c0_i32_0 : i32, i32, i32
  }
  func.func @transform_5(%arg0: i32) -> (i32, i32) {
    %c0_i32 = arith.constant 0 : i32
    %c0_i32_0 = arith.constant 0 : i32
    %c0_i32_1 = arith.constant 0 : i32
    return %c0_i32, %c0_i32_0 : i32, i32
  }
  func.func @transform_6(%arg0: i32) -> (i32, i32) {
    %c0_i32 = arith.constant 0 : i32
    %c0_i32_0 = arith.constant 0 : i32
    %c0_i32_1 = arith.constant 0 : i32
    return %c0_i32, %c0_i32_0 : i32, i32
  }
  func.func @transform_7(%arg0: i32) -> (i32, i32) {
    %c0_i32 = arith.constant 0 : i32
    %c0_i32_0 = arith.constant 0 : i32
    %c0_i32_1 = arith.constant 0 : i32
    return %c0_i32, %c0_i32_0 : i32, i32
  }
  func.func @transform_8(%arg0: i32) -> (i32, i32, i32, i32) {
    %c0_i32 = arith.constant 0 : i32
    %c0_i32_0 = arith.constant 0 : i32
    %c0_i32_1 = arith.constant 0 : i32
    %c0_i32_2 = arith.constant 0 : i32
    return %arg0, %c0_i32, %c0_i32_0, %c0_i32_1 : i32, i32, i32, i32
  }
  func.func @transform_9(%arg0: i32) -> (i32, i32, i32) {
    %c0_i32 = arith.constant 0 : i32
    %c0_i32_0 = arith.constant 0 : i32
    %c0_i32_1 = arith.constant 0 : i32
    %c0_i32_2 = arith.constant 0 : i32
    return %c0_i32, %c0_i32_0, %c0_i32_1 : i32, i32, i32
  }
  func.func @transform_10(%arg0: i32) -> (i32, i32) {
    %c0_i32 = arith.constant 0 : i32
    %c0_i32_0 = arith.constant 0 : i32
    %c0_i32_1 = arith.constant 0 : i32
    return %c0_i32, %c0_i32_0 : i32, i32
  }
  func.func @transform_11(%arg0: i32) -> (i32, i32) {
    %c0_i32 = arith.constant 0 : i32
    %c0_i32_0 = arith.constant 0 : i32
    %c0_i32_1 = arith.constant 0 : i32
    return %c0_i32, %c0_i32_0 : i32, i32
  }
  func.func @transform_12(%arg0: i32) -> (i32, i32, i32) {
    %c0_i32 = arith.constant 0 : i32
    %c0_i32_0 = arith.constant 0 : i32
    %c0_i32_1 = arith.constant 0 : i32
    return %arg0, %c0_i32, %c0_i32_0 : i32, i32, i32
  }
}

</mosaic_0001>

<llo_original>
// kernel: tpu_custom_call.1
$region0: #{tpu_custom_call.1}
  #allocation0 [shape = 'u32[]', space=smem, size = 0x4, offset = 0x4, fixed_abs, tag = 'smem constant byte address 0x4 - core index']
  #allocation1 [shape = 'u32[144,128]{1,0:T(1,128)}', space=vmem, size = 0x12000, scoped, tag = 'internal scratch']
  %s0 = inlined_call_operand.vmem [shape: f32[2,1,16], index: 0, kind: input, shape index: {}]
  %s1 = inlined_call_operand.vmem [shape: f32[8,16], index: 1, kind: input, shape index: {}]
  %s2 = inlined_call_operand.vmem [shape: f32[8,1], index: 2, kind: input, shape index: {}]
  %s3 = inlined_call_operand.vmem [shape: f32[8,1], index: 3, kind: input, shape index: {}]
  %s4 = inlined_call_operand.hbm [shape: f32[2,72,256], index: 4, kind: input, shape index: {}]
  %s5 = inlined_call_operand.vmem [shape: f32[8,72], index: 5, kind: input, shape index: {}]
  %s6 = inlined_call_operand.vmem [shape: f32[8,1], index: 6, kind: input, shape index: {}]
  %s7 = inlined_call_operand.vmem [shape: f32[8,1], index: 7, kind: input, shape index: {}]
  %s8 = inlined_call_operand.hbm [shape: f32[2,4,64,64], index: 8, kind: input, shape index: {}]
  %s9 = inlined_call_operand.vmem [shape: f32[4,8,64], index: 9, kind: input, shape index: {}]
  %s10 = inlined_call_operand.vmem [shape: f32[8,1], index: 10, kind: input, shape index: {}]
  %s11 = inlined_call_operand.vmem [shape: f32[8,1], index: 11, kind: input, shape index: {}]
  %s12 = inlined_call_operand.hbm [shape: f32[2,8,256], index: 12, kind: output, shape index: {}]
  %s13 = sld [smem:[#allocation0]]
  $region89: #{tpu_custom_call.1} parent=0
    _
  %s15 = ssub.s32 1, %s13
  %s16 = scalar_select 0, %s15, %s13
  $region1: #{tpu_custom_call.1} parent=0
    #allocation2 [shape = 'u8[147456]{0}', space=vmem, size = 0x24000, scoped, tag = 'input window, operand 4']
    #allocation3 [shape = 's32[2]{0}', space=sflag, size = 0x8, scoped, tag = 'scoped memory for tpu_custom_call.1']
    #allocation4 [shape = 's32[2]{0}', space=sflag, size = 0x8, scoped, tag = 'scoped memory for tpu_custom_call.1']
    #allocation5 [shape = 'u8[262144]{0}', space=vmem, size = 0x40000, scoped, tag = 'input window, operand 8']
    #allocation6 [shape = 's32[2]{0}', space=sflag, size = 0x8, scoped, tag = 'scoped memory for tpu_custom_call.1']
    #allocation7 [shape = 'u8[16384]{0}', space=vmem, size = 0x4000, scoped, tag = 'output window, operand 0']
    %17 = vsyncpa [#allocation3], 0
    %s18 = scalar_lea.sflag [#allocation3], 1
    %19 = vsyncpa %s18, 0
    %20 = vsyncpa [#allocation6], 0
    %s21 = scalar_lea.sflag [#allocation6], 1
    %22 = vsyncpa %s21, 0
    %23 = vsyncpa [#allocation4], 0
    %s24 = scalar_lea.sflag [#allocation4], 1
    %25 = vsyncpa %s24, 0
    loop: start=0, step=1, limit=4
    $region2: #{tpu_custom_call.1} parent=1 // loop_pre_header
      _
    $region3: #{tpu_custom_call.1} parent=1 // loop_header
      %s27 = sphi 0, %s31
      %p28 = scmp.ge.s32.totalorder %s27, 4
      %s37 = sphi 0, %s39
      %s40 = sphi 0, %s37
      %s41 = sphi 0, %s40
      %s57 = sphi 0, %s41
      %s61 = sphi 0, %s61
      %s63 = sphi 0, %s61
      %s64 = sphi 0, %s63
      %s78 = sphi 0, %s64
      %s82 = sphi 0, %s82
      %s84 = sphi 0, %s82
      %s85 = sphi 0, %s84
      %s99 = sphi 0, %s85
      %s103 = sphi 0, %s103
      %s105 = sphi 0, %s103
      %s106 = sphi 0, %s105
      %s120 = sphi 0, %s106
      %s126 = sphi 0, %s128
      %s129 = sphi 0, %s126
      %s130 = sphi 0, %s129
      %s146 = sphi 0, %s130
      %s150 = sphi 0, %s150
      %s152 = sphi 0, %s150
      %s153 = sphi 0, %s152
      %s167 = sphi 0, %s153
      %s171 = sphi 0, %s171
      %s173 = sphi 0, %s171
      %s174 = sphi 0, %s173
      %s188 = sphi 0, %s174
      %s192 = sphi 0, %s192
      %s194 = sphi 0, %s192
      %s195 = sphi 0, %s194
      %s209 = sphi 0, %s195
      %s215 = sphi 0, %s217
      %s218 = sphi 0, %s215
      %s219 = sphi 0, %s218
      %s235 = sphi 0, %s219
      %s239 = sphi 0, %s239
      %s241 = sphi 0, %s239
      %s242 = sphi 0, %s241
      %s256 = sphi 0, %s242
      %s260 = sphi 0, %s260
      %s262 = sphi 0, %s260
      %s263 = sphi 0, %s262
      %s277 = sphi 0, %s263
      %s281 = sphi 0, %s281
      %s283 = sphi 0, %s281
      %s284 = sphi 0, %s283
      %s298 = sphi 0, %s284
      %s304 = sphi 0, %s306
      %s307 = sphi 0, %s304
      %s308 = sphi 0, %s307
      %s324 = sphi 0, %s308
    $region4: #{tpu_custom_call.1} parent=1 // loop_header_branch
      %30 = sbr.rel (%p28) target = $region8
    $region5: #{tpu_custom_call.1} parent=1 // loop_body
      %s32 = ssub.s32 %s27, 1
      %s33 = ssub.s32 %s27, 2
      %s34 = sadd.s32 %s27, 1
      %s35 = ssub.s32 %s27, %s34
      %p36 = scmp.eq.s32.totalorder %s35, 0
      %s38 = sadd.s32 %s37, 1
      %s39 = scalar_select %p36, %s37, %s38
      %p42 = pneg %p36
      %p43 = scmp.eq.s32.totalorder %s27, 1
      %p44 = por %p42, %p43
      %p45 = scmp.ne.s32.totalorder %s37, %s40
      %p46 = scmp.eq.s32.totalorder %s27, 0
      %p47 = por %p45, %p46
      %p48 = scmp.ne.s32.totalorder %s37, %s40
      %p49 = scmp.eq.s32.totalorder %s32, 1
      %p50 = por %p48, %p49
      %p51 = scmp.ne.s32.totalorder %s40, %s41
      %p52 = scmp.eq.s32.totalorder %s32, 0
      %p53 = por %p51, %p52
      %p54 = scmp.ne.s32.totalorder %s40, %s41
      %p55 = scmp.eq.s32.totalorder %s33, 1
      %p56 = por %p54, %p55
      %p58 = scmp.ne.s32.totalorder %s41, %s57
      %p59 = scmp.eq.s32.totalorder %s33, 0
      %p60 = por %p58, %p59
      %s62 = sadd.s32 %s61, 1
      %p65 = scmp.eq.s32.totalorder %s27, 1
      %p66 = scmp.ne.s32.totalorder %s61, %s63
      %p67 = scmp.eq.s32.totalorder %s27, 0
      %p68 = por %p66, %p67
      %p69 = scmp.ne.s32.totalorder %s61, %s63
      %p70 = scmp.eq.s32.totalorder %s32, 1
      %p71 = por %p69, %p70
      %p72 = scmp.ne.s32.totalorder %s63, %s64
      %p73 = scmp.eq.s32.totalorder %s32, 0
      %p74 = por %p72, %p73
      %p75 = scmp.ne.s32.totalorder %s63, %s64
      %p76 = scmp.eq.s32.totalorder %s33, 1
      %p77 = por %p75, %p76
      %p79 = scmp.ne.s32.totalorder %s64, %s78
      %p80 = scmp.eq.s32.totalorder %s33, 0
      %p81 = por %p79, %p80
      %s83 = sadd.s32 %s82, 1
      %p86 = scmp.eq.s32.totalorder %s27, 1
      %p87 = scmp.ne.s32.totalorder %s82, %s84
      %p88 = scmp.eq.s32.totalorder %s27, 0
      %p89 = por %p87, %p88
      %p90 = scmp.ne.s32.totalorder %s82, %s84
      %p91 = scmp.eq.s32.totalorder %s32, 1
      %p92 = por %p90, %p91
      %p93 = scmp.ne.s32.totalorder %s84, %s85
      %p94 = scmp.eq.s32.totalorder %s32, 0
      %p95 = por %p93, %p94
      %p96 = scmp.ne.s32.totalorder %s84, %s85
      %p97 = scmp.eq.s32.totalorder %s33, 1
      %p98 = por %p96, %p97
      %p100 = scmp.ne.s32.totalorder %s85, %s99
      %p101 = scmp.eq.s32.totalorder %s33, 0
      %p102 = por %p100, %p101
      %s104 = sadd.s32 %s103, 1
      %p107 = scmp.eq.s32.totalorder %s27, 1
      %p108 = scmp.ne.s32.totalorder %s103, %s105
      %p109 = scmp.eq.s32.totalorder %s27, 0
      %p110 = por %p108, %p109
      %p111 = scmp.ne.s32.totalorder %s103, %s105
      %p112 = scmp.eq.s32.totalorder %s32, 1
      %p113 = por %p111, %p112
      %p114 = scmp.ne.s32.totalorder %s105, %s106
      %p115 = scmp.eq.s32.totalorder %s32, 0
      %p116 = por %p114, %p115
      %p117 = scmp.ne.s32.totalorder %s105, %s106
      %p118 = scmp.eq.s32.totalorder %s33, 1
      %p119 = por %p117, %p118
      %p121 = scmp.ne.s32.totalorder %s106, %s120
      %p122 = scmp.eq.s32.totalorder %s33, 0
      %p123 = por %p121, %p122
      %s124 = ssub.s32 %s27, %s34
      %p125 = scmp.eq.s32.totalorder %s124, 0
      %s127 = sadd.s32 %s126, 1
      %s128 = scalar_select %p125, %s126, %s127
      %p131 = pneg %p125
      %p132 = scmp.eq.s32.totalorder %s27, 1
      %p133 = por %p131, %p132
      %p134 = scmp.ne.s32.totalorder %s126, %s129
      %p135 = scmp.eq.s32.totalorder %s27, 0
      %p136 = por %p134, %p135
      %p137 = scmp.ne.s32.totalorder %s126, %s129
      %p138 = scmp.eq.s32.totalorder %s32, 1
      %p139 = por %p137, %p138
      %p140 = scmp.ne.s32.totalorder %s129, %s130
      %p141 = scmp.eq.s32.totalorder %s32, 0
      %p142 = por %p140, %p141
      %p143 = scmp.ne.s32.totalorder %s129, %s130
      %p144 = scmp.eq.s32.totalorder %s33, 1
      %p145 = por %p143, %p144
      %p147 = scmp.ne.s32.totalorder %s130, %s146
      %p148 = scmp.eq.s32.totalorder %s33, 0
      %p149 = por %p147, %p148
      %s151 = sadd.s32 %s150, 1
      %p154 = scmp.eq.s32.totalorder %s27, 1
      %p155 = scmp.ne.s32.totalorder %s150, %s152
      %p156 = scmp.eq.s32.totalorder %s27, 0
      %p157 = por %p155, %p156
      %p158 = scmp.ne.s32.totalorder %s150, %s152
      %p159 = scmp.eq.s32.totalorder %s32, 1
      %p160 = por %p158, %p159
      %p161 = scmp.ne.s32.totalorder %s152, %s153
      %p162 = scmp.eq.s32.totalorder %s32, 0
      %p163 = por %p161, %p162
      %p164 = scmp.ne.s32.totalorder %s152, %s153
      %p165 = scmp.eq.s32.totalorder %s33, 1
      %p166 = por %p164, %p165
      %p168 = scmp.ne.s32.totalorder %s153, %s167
      %p169 = scmp.eq.s32.totalorder %s33, 0
      %p170 = por %p168, %p169
      %s172 = sadd.s32 %s171, 1
      %p175 = scmp.eq.s32.totalorder %s27, 1
      %p176 = scmp.ne.s32.totalorder %s171, %s173
      %p177 = scmp.eq.s32.totalorder %s27, 0
      %p178 = por %p176, %p177
      %p179 = scmp.ne.s32.totalorder %s171, %s173
      %p180 = scmp.eq.s32.totalorder %s32, 1
      %p181 = por %p179, %p180
      %p182 = scmp.ne.s32.totalorder %s173, %s174
      %p183 = scmp.eq.s32.totalorder %s32, 0
      %p184 = por %p182, %p183
      %p185 = scmp.ne.s32.totalorder %s173, %s174
      %p186 = scmp.eq.s32.totalorder %s33, 1
      %p187 = por %p185, %p186
      %p189 = scmp.ne.s32.totalorder %s174, %s188
      %p190 = scmp.eq.s32.totalorder %s33, 0
      %p191 = por %p189, %p190
      %s193 = sadd.s32 %s192, 1
      %p196 = scmp.eq.s32.totalorder %s27, 1
      %p197 = scmp.ne.s32.totalorder %s192, %s194
      %p198 = scmp.eq.s32.totalorder %s27, 0
      %p199 = por %p197, %p198
      %p200 = scmp.ne.s32.totalorder %s192, %s194
      %p201 = scmp.eq.s32.totalorder %s32, 1
      %p202 = por %p200, %p201
      %p203 = scmp.ne.s32.totalorder %s194, %s195
      %p204 = scmp.eq.s32.totalorder %s32, 0
      %p205 = por %p203, %p204
      %p206 = scmp.ne.s32.totalorder %s194, %s195
      %p207 = scmp.eq.s32.totalorder %s33, 1
      %p208 = por %p206, %p207
      %p210 = scmp.ne.s32.totalorder %s195, %s209
      %p211 = scmp.eq.s32.totalorder %s33, 0
      %p212 = por %p210, %p211
      %s213 = ssub.s32 %s27, %s34
      %p214 = scmp.eq.s32.totalorder %s213, 0
      %s216 = sadd.s32 %s215, 1
      %s217 = scalar_select %p214, %s215, %s216
      %p220 = pneg %p214
      %p221 = scmp.eq.s32.totalorder %s27, 1
      %p222 = por %p220, %p221
      %p223 = scmp.ne.s32.totalorder %s215, %s218
      %p224 = scmp.eq.s32.totalorder %s27, 0
      %p225 = por %p223, %p224
      %p226 = scmp.ne.s32.totalorder %s215, %s218
      %p227 = scmp.eq.s32.totalorder %s32, 1
      %p228 = por %p226, %p227
      %p229 = scmp.ne.s32.totalorder %s218, %s219
      %p230 = scmp.eq.s32.totalorder %s32, 0
      %p231 = por %p229, %p230
      %p232 = scmp.ne.s32.totalorder %s218, %s219
      %p233 = scmp.eq.s32.totalorder %s33, 1
      %p234 = por %p232, %p233
      %p236 = scmp.ne.s32.totalorder %s219, %s235
      %p237 = scmp.eq.s32.totalorder %s33, 0
      %p238 = por %p236, %p237
      %s240 = sadd.s32 %s239, 1
      %p243 = scmp.eq.s32.totalorder %s27, 1
      %p244 = scmp.ne.s32.totalorder %s239, %s241
      %p245 = scmp.eq.s32.totalorder %s27, 0
      %p246 = por %p244, %p245
      %p247 = scmp.ne.s32.totalorder %s239, %s241
      %p248 = scmp.eq.s32.totalorder %s32, 1
      %p249 = por %p247, %p248
      %p250 = scmp.ne.s32.totalorder %s241, %s242
      %p251 = scmp.eq.s32.totalorder %s32, 0
      %p252 = por %p250, %p251
      %p253 = scmp.ne.s32.totalorder %s241, %s242
      %p254 = scmp.eq.s32.totalorder %s33, 1
      %p255 = por %p253, %p254
      %p257 = scmp.ne.s32.totalorder %s242, %s256
      %p258 = scmp.eq.s32.totalorder %s33, 0
      %p259 = por %p257, %p258
      %s261 = sadd.s32 %s260, 1
      %p264 = scmp.eq.s32.totalorder %s27, 1
      %p265 = scmp.ne.s32.totalorder %s260, %s262
      %p266 = scmp.eq.s32.totalorder %s27, 0
      %p267 = por %p265, %p266
      %p268 = scmp.ne.s32.totalorder %s260, %s262
      %p269 = scmp.eq.s32.totalorder %s32, 1
      %p270 = por %p268, %p269
      %p271 = scmp.ne.s32.totalorder %s262, %s263
      %p272 = scmp.eq.s32.totalorder %s32, 0
      %p273 = por %p271, %p272
      %p274 = scmp.ne.s32.totalorder %s262, %s263
      %p275 = scmp.eq.s32.totalorder %s33, 1
      %p276 = por %p274, %p275
      %p278 = scmp.ne.s32.totalorder %s263, %s277
      %p279 = scmp.eq.s32.totalorder %s33, 0
      %p280 = por %p278, %p279
      %s282 = sadd.s32 %s281, 1
      %p285 = scmp.eq.s32.totalorder %s27, 1
      %p286 = scmp.ne.s32.totalorder %s281, %s283
      %p287 = scmp.eq.s32.totalorder %s27, 0
      %p288 = por %p286, %p287
      %p289 = scmp.ne.s32.totalorder %s281, %s283
      %p290 = scmp.eq.s32.totalorder %s32, 1
      %p291 = por %p289, %p290
      %p292 = scmp.ne.s32.totalorder %s283, %s284
      %p293 = scmp.eq.s32.totalorder %s32, 0
      %p294 = por %p292, %p293
      %p295 = scmp.ne.s32.totalorder %s283, %s284
      %p296 = scmp.eq.s32.totalorder %s33, 1
      %p297 = por %p295, %p296
      %p299 = scmp.ne.s32.totalorder %s284, %s298
      %p300 = scmp.eq.s32.totalorder %s33, 0
      %p301 = por %p299, %p300
      %s302 = ssub.s32 %s27, %s34
      %p303 = scmp.eq.s32.totalorder %s302, 0
      %s305 = sadd.s32 %s304, 1
      %s306 = scalar_select %p303, %s304, %s305
      %p309 = pneg %p303
      %p310 = scmp.eq.s32.totalorder %s27, 1
      %p311 = por %p309, %p310
      %p312 = scmp.ne.s32.totalorder %s304, %s307
      %p313 = scmp.eq.s32.totalorder %s27, 0
      %p314 = por %p312, %p313
      %p315 = scmp.ne.s32.totalorder %s304, %s307
      %p316 = scmp.eq.s32.totalorder %s32, 1
      %p317 = por %p315, %p316
      %p318 = scmp.ne.s32.totalorder %s307, %s308
      %p319 = scmp.eq.s32.totalorder %s32, 0
      %p320 = por %p318, %p319
      %p321 = scmp.ne.s32.totalorder %s307, %s308
      %p322 = scmp.eq.s32.totalorder %s33, 1
      %p323 = por %p321, %p322
      %p325 = scmp.ne.s32.totalorder %s308, %s324
      %p326 = scmp.eq.s32.totalorder %s33, 0
      %p327 = por %p325, %p326
      %p328 = scmp.le.s32.totalorder 1, %s27
      %p329 = scmp.lt.s32.totalorder %s27, 3
      %p330 = pnand %p328, %p329
      %p331 = pneg %p330
      // Predicated region
      $region9: #{tpu_custom_call.1} parent=5 // pred_check
        _
      $region10: #{tpu_custom_call.1} parent=5 // pred_check_branch
        %333 = sbr.rel (%p330) target = $region12
      $region11: #{tpu_custom_call.1} parent=5 // pred_region
        %s334 = ssub.s32 %s27, 1
        // Predicated region
        $region13: #{tpu_custom_call.1} parent=11 // pred_check
          %p335 = pneg %p74
        $region14: #{tpu_custom_call.1} parent=11 // pred_check_branch
          %337 = sbr.rel (%p335) target = $region16
        $region15: #{tpu_custom_call.1} parent=11 // pred_region
          _
        $region16: #{tpu_custom_call.1} parent=11 // pred_fallthru
          _
        // Predicated region
        $region17: #{tpu_custom_call.1} parent=11 // pred_check
          %p338 = pneg %p95
        $region18: #{tpu_custom_call.1} parent=11 // pred_check_branch
          %340 = sbr.rel (%p338) target = $region20
        $region19: #{tpu_custom_call.1} parent=11 // pred_region
          _
        $region20: #{tpu_custom_call.1} parent=11 // pred_fallthru
          _
        // Predicated region
        $region21: #{tpu_custom_call.1} parent=11 // pred_check
          %p341 = pneg %p116
        $region22: #{tpu_custom_call.1} parent=11 // pred_check_branch
          %343 = sbr.rel (%p341) target = $region24
        $region23: #{tpu_custom_call.1} parent=11 // pred_region
          _
        $region24: #{tpu_custom_call.1} parent=11 // pred_fallthru
          _
        // Predicated region
        $region25: #{tpu_custom_call.1} parent=11 // pred_check
          %p344 = pneg %p163
        $region26: #{tpu_custom_call.1} parent=11 // pred_check_branch
          %346 = sbr.rel (%p344) target = $region28
        $region27: #{tpu_custom_call.1} parent=11 // pred_region
          _
        $region28: #{tpu_custom_call.1} parent=11 // pred_fallthru
          _
        // Predicated region
        $region29: #{tpu_custom_call.1} parent=11 // pred_check
          %p347 = pneg %p184
        $region30: #{tpu_custom_call.1} parent=11 // pred_check_branch
          %349 = sbr.rel (%p347) target = $region32
        $region31: #{tpu_custom_call.1} parent=11 // pred_region
          _
        $region32: #{tpu_custom_call.1} parent=11 // pred_fallthru
          _
        // Predicated region
        $region33: #{tpu_custom_call.1} parent=11 // pred_check
          %p350 = pneg %p205
        $region34: #{tpu_custom_call.1} parent=11 // pred_check_branch
          %352 = sbr.rel (%p350) target = $region36
        $region35: #{tpu_custom_call.1} parent=11 // pred_region
          _
        $region36: #{tpu_custom_call.1} parent=11 // pred_fallthru
          _
        // Predicated region
        $region37: #{tpu_custom_call.1} parent=11 // pred_check
          %p353 = pneg %p252
        $region38: #{tpu_custom_call.1} parent=11 // pred_check_branch
          %355 = sbr.rel (%p353) target = $region40
        $region39: #{tpu_custom_call.1} parent=11 // pred_region
          _
        $region40: #{tpu_custom_call.1} parent=11 // pred_fallthru
          _
        // Predicated region
        $region41: #{tpu_custom_call.1} parent=11 // pred_check
          %p356 = pneg %p273
        $region42: #{tpu_custom_call.1} parent=11 // pred_check_branch
          %358 = sbr.rel (%p356) target = $region44
        $region43: #{tpu_custom_call.1} parent=11 // pred_region
          _
        $region44: #{tpu_custom_call.1} parent=11 // pred_fallthru
          _
        // Predicated region
        $region45: #{tpu_custom_call.1} parent=11 // pred_check
          %p359 = pneg %p294
        $region46: #{tpu_custom_call.1} parent=11 // pred_check_branch
          %361 = sbr.rel (%p359) target = $region48
        $region47: #{tpu_custom_call.1} parent=11 // pred_region
          _
        $region48: #{tpu_custom_call.1} parent=11 // pred_fallthru
          _
      $region12: #{tpu_custom_call.1} parent=5 // pred_fallthru
        _
      %p362 = scmp.lt.s32.totalorder %s27, 2
      // Predicated region
      $region49: #{tpu_custom_call.1} parent=5 // pred_check
        %p363 = pneg %p362
      $region50: #{tpu_custom_call.1} parent=5 // pred_check_branch
        %365 = sbr.rel (%p363) target = $region52
      $region51: #{tpu_custom_call.1} parent=5 // pred_region
        // Predicated region
        $region53: #{tpu_custom_call.1} parent=51 // pred_check
          %p366 = pneg %p47
        $region54: #{tpu_custom_call.1} parent=51 // pred_check_branch
          %368 = sbr.rel (%p366) target = $region56
        $region55: #{tpu_custom_call.1} parent=51 // pred_region
          %p369 = scmp.lt.s32.totalorder %s27, 1
          %s370 = scalar_select %p369, %s27, 1
          %s371 = scalar_lea.vmem %s0, %s370
        $region56: #{tpu_custom_call.1} parent=51 // pred_fallthru
          _
        // Predicated region
        $region57: #{tpu_custom_call.1} parent=51 // pred_check
          %p372 = pneg %p136
        $region58: #{tpu_custom_call.1} parent=51 // pred_check_branch
          %374 = sbr.rel (%p372) target = $region60
        $region59: #{tpu_custom_call.1} parent=51 // pred_region
          %s375 = sand.u32 %s126, 1
          %s376 = scalar_lea.sflag [#allocation3], %s375
          %s377 = sand.u32 %s126, 1
          %s378 = smul.addr %s377, 144
          %s379 = scalar_lea.vmem [#allocation2], %s378
          %s381 = ssub.s32 2304, 2304
          %382 = vsyncadd %s376, %s381
          %s383 = smul.addr %s27, 18
          %s384 = smul.addr %s383, 128
          %s385 = scalar_lea.hbm %s4, %s384
          %s386 = sshll.u32 %s379, 4
          %s387 = int_to_ptr.vmem [resolvable:$true] %s386
          %392 = dma.hbm_to_vmem [thread:$0]  %s385, 2304, %s387, %s376, 256, 256, 16
        $region60: #{tpu_custom_call.1} parent=51 // pred_fallthru
          _
        // Predicated region
        $region61: #{tpu_custom_call.1} parent=51 // pred_check
          %p393 = pneg %p225
        $region62: #{tpu_custom_call.1} parent=51 // pred_check_branch
          %395 = sbr.rel (%p393) target = $region64
        $region63: #{tpu_custom_call.1} parent=51 // pred_region
          %s396 = sand.u32 %s215, 1
          %s397 = scalar_lea.sflag [#allocation6], %s396
          %s398 = sand.u32 %s215, 1
          %s399 = smul.addr %s398, 256
          %s400 = scalar_lea.vmem [#allocation5], %s399
          %s402 = ssub.s32 4096, 4096
          %403 = vsyncadd %s397, %s402
          %s404 = smul.addr %s27, 32
          %s405 = smul.addr %s404, 128
          %s406 = scalar_lea.hbm %s8, %s405
          %s407 = sshll.u32 %s400, 4
          %s408 = int_to_ptr.vmem [resolvable:$true] %s407
          %413 = dma.hbm_to_vmem [thread:$0]  %s406, 4096, %s408, %s397, 128, 128, 8
        $region64: #{tpu_custom_call.1} parent=51 // pred_fallthru
          _
      $region52: #{tpu_custom_call.1} parent=5 // pred_fallthru
        _
      %p414 = scmp.le.s32.totalorder 1, %s27
      %p415 = scmp.lt.s32.totalorder %s27, 3
      %p416 = pnand %p414, %p415
      %p417 = pneg %p416
      // Predicated region
      $region65: #{tpu_custom_call.1} parent=5 // pred_check
        _
      $region66: #{tpu_custom_call.1} parent=5 // pred_check_branch
        %419 = sbr.rel (%p416) target = $region68
      $region67: #{tpu_custom_call.1} parent=5 // pred_region
        %s420 = ssub.s32 %s27, 1
        %s421 = sand.u32 %s129, 1
        %s422 = scalar_lea.sflag [#allocation3], %s421
        %s423 = sand.u32 %s129, 1
        %s424 = smul.addr %s423, 144
        %s425 = scalar_lea.vmem [#allocation2], %s424
        // Predicated region
        $region69: #{tpu_custom_call.1} parent=67 // pred_check
          %p426 = pneg %p142
        $region70: #{tpu_custom_call.1} parent=67 // pred_check_branch
          %428 = sbr.rel (%p426) target = $region72
        $region71: #{tpu_custom_call.1} parent=67 // pred_region
          %429 = dma.done %s422, 2304
        $region72: #{tpu_custom_call.1} parent=67 // pred_fallthru
          _
        %s430 = sand.u32 %s218, 1
        %s431 = scalar_lea.sflag [#allocation6], %s430
        %s432 = sand.u32 %s218, 1
        %s433 = smul.addr %s432, 256
        %s434 = scalar_lea.vmem [#allocation5], %s433
        // Predicated region
        $region73: #{tpu_custom_call.1} parent=67 // pred_check
          %p435 = pneg %p231
        $region74: #{tpu_custom_call.1} parent=67 // pred_check_branch
          %437 = sbr.rel (%p435) target = $region76
        $region75: #{tpu_custom_call.1} parent=67 // pred_region
          %438 = dma.done %s431, 4096
        $region76: #{tpu_custom_call.1} parent=67 // pred_fallthru
          _
        %p439 = scmp.lt.s32.totalorder %s32, 1
        %s440 = scalar_select %p439, %s32, 1
        %s441 = scalar_lea.vmem %s0, %s440
        %p442 = pneg %p53
        %p443 = pneg %p50
        %p444 = pneg %p74
        %p445 = pneg %p71
        %p446 = pneg %p95
        %p447 = pneg %p92
        %p448 = pneg %p116
        %p449 = pneg %p113
        %s450 = sand.u32 %s129, 1
        %s451 = scalar_lea.sflag [#allocation3], %s450
        %s452 = sand.u32 %s129, 1
        %s453 = smul.addr %s452, 144
        %s454 = scalar_lea.vmem [#allocation2], %s453
        %p455 = pneg %p142
        %p456 = pneg %p139
        %p457 = pneg %p163
        %p458 = pneg %p160
        %p459 = pneg %p184
        %p460 = pneg %p181
        %p461 = pneg %p205
        %p462 = pneg %p202
        %s463 = sand.u32 %s218, 1
        %s464 = scalar_lea.sflag [#allocation6], %s463
        %s465 = sand.u32 %s218, 1
        %s466 = smul.addr %s465, 256
        %s467 = scalar_lea.vmem [#allocation5], %s466
        %p468 = pneg %p231
        %p469 = pneg %p228
        %p470 = pneg %p252
        %p471 = pneg %p249
        %p472 = pneg %p273
        %p473 = pneg %p270
        %p474 = pneg %p294
        %p475 = pneg %p291
        %p476 = pneg %p320
        %p477 = pneg %p317
        %s478 = sand.u32 %s307, 1
        %s479 = scalar_lea.sflag [#allocation4], %s478
        %s480 = sand.u32 %s307, 1
        %s481 = smul.addr %s480, 16
        %s482 = scalar_lea.vmem [#allocation7], %s481
        %p483 = scmp.lt.s32.totalorder %s32, 1
        %s484 = scalar_select %p483, %s32, 1
        %s485 = scalar_lea.vmem %s0, %s484
        %v486 = vld [vmem:[%s1] sm:$0xff]
        %v487 = vld [vmem:[%s485] sm:$0x1]
        %v489 = vlaneseq
        %v490 = vshrl.u32 %v489, 7
        %v491 = vsub.s32 0, %v490
        %v492 = vrot.slane %v487, %v491
        %v494 = vmul.f32 %v486, %v492
        %vm495 = vcmask 130048
        %v496 = vsel %vm495, %v494, 0.0
        %497 = vadd.xlane.f32.xlu0 %v496
        %v498 = vpop.xlane.xlu0 %497
        %v499 = vld [vmem:[%s2] sm:$0xff]
        %v500 = vmul.f32 %v498, %v499
        %v501 = vld [vmem:[%s3] sm:$0xff]
        %v502 = vadd.f32 %v500, %v501
        %v503 = vmax.f32 %v502, 0.0
        %v504 = vld [vmem:[%s5] sm:$0xff]
        %v505 = vld [vmem:[%s425] sm:$0xff]
        %v506 = vld [vmem:[%s425 + $0x8] sm:$0xff]
        %v507 = vld [vmem:[%s425 + $0x10] sm:$0xff]
        %v508 = vld [vmem:[%s425 + $0x18] sm:$0xff]
        %v509 = vld [vmem:[%s425 + $0x20] sm:$0xff]
        %v510 = vld [vmem:[%s425 + $0x28] sm:$0xff]
        %v511 = vld [vmem:[%s425 + $0x30] sm:$0xff]
        %v512 = vld [vmem:[%s425 + $0x38] sm:$0xff]
        %v513 = vld [vmem:[%s425 + $0x40] sm:$0xff]
        %v514 = vld [vmem:[%s425 + $0x48] sm:$0xff]
        %v515 = vld [vmem:[%s425 + $0x50] sm:$0xff]
        %v516 = vld [vmem:[%s425 + $0x58] sm:$0xff]
        %v517 = vld [vmem:[%s425 + $0x60] sm:$0xff]
        %v518 = vld [vmem:[%s425 + $0x68] sm:$0xff]
        %v519 = vld [vmem:[%s425 + $0x70] sm:$0xff]
        %v520 = vld [vmem:[%s425 + $0x78] sm:$0xff]
        %v521 = vld [vmem:[%s425 + $0x80] sm:$0xff]
        %v522 = vld [vmem:[%s425 + $0x88] sm:$0xff]
        %vm523 = vcmask 588800
        %v525 = vsel %vm523, %v504, 0
        %527 = vmatprep.subr.mxu0 %v506
        %528 = vmatpush1.msra.mxu0 %v505
        %529 = vmatprep.subr.mxu0 %v508
        %530 = vmatpush1.msra.mxu0 %v507
        %531 = vmatprep.subr.mxu0 %v510
        %532 = vmatpush1.msra.mxu0 %v509
        %533 = vmatprep.subr.mxu0 %v512
        %534 = vmatpush1.msra.mxu0 %v511
        %535 = vmatprep.subr.mxu0 %v514
        %536 = vmatpush1.msra.mxu0 %v513
        %537 = vmatprep.subr.mxu0 %v516
        %538 = vmatpush1.msra.mxu0 %v515
        %539 = vmatprep.subr.mxu0 %v518
        %540 = vmatpush1.msra.mxu0 %v517
        %541 = vmatprep.subr.mxu0 %v520
        %542 = vmatpush1.msra.mxu0 %v519
        %543 = vmatprep.subr.mxu0 %v522
        %544 = vmatpush1.msra.mxu0 %v521
        %545 = vmatprep.subr.mxu0 0.0
        %546 = vmatpush1.msra.mxu0 0.0
        %547 = vmatprep.subr.mxu0 0.0
        %548 = vmatpush1.msra.mxu0 0.0
        %549 = vmatprep.subr.mxu0 0.0
        %550 = vmatpush1.msra.mxu0 0.0
        %551 = vmatprep.subr.mxu0 0.0
        %552 = vmatpush1.msra.mxu0 0.0
        %553 = vmatprep.subr.mxu0 0.0
        %554 = vmatpush1.msra.mxu0 0.0
        %555 = vmatprep.subr.mxu0 0.0
        %556 = vmatpush1.msra.mxu0 0.0
        %557 = vmatprep.subr.mxu0 0.0
        %558 = vmatpush1.msra.mxu0 0.0
        %559 = vmatprep.subr.mxu0 0.0
        %560 = vmatpush1.msra.mxu0 0.0
        %561 = vmatprep.subr.mxu0 0.0
        %562 = vmatpush1.msra.mxu0 0.0
        %563 = vmatprep.subr.mxu0 0.0
        %564 = vmatpush1.msra.mxu0 0.0
        %565 = vmatprep.subr.mxu0 0.0
        %566 = vmatpush1.msra.mxu0 0.0
        %567 = vmatprep.subr.mxu0 0.0
        %568 = vmatpush1.msra.mxu0 0.0
        %569 = vmatprep.subr.mxu0 0.0
        %570 = vmatpush1.msra.mxu0 0.0
        %571 = vmatprep.subr.mxu0 0.0
        %572 = vmatpush1.msra.mxu0 0.0
        %573 = vmatprep.subr.mxu0 0.0
        %574 = vmatpush1.msra.mxu0 0.0
        %575 = vmatprep.subr.mxu0 0.0
        %576 = vmatpush1.msra.mxu0 0.0
        %577 = vmatprep.subr.mxu0 0.0
        %578 = vmatpush1.msra.mxu0 0.0
        %579 = vmatprep.subr.mxu0 0.0
        %580 = vmatpush1.msra.mxu0 0.0
        %581 = vmatprep.subr.mxu0 0.0
        %582 = vmatpush1.msra.mxu0 0.0
        %583 = vmatprep.subr.mxu0 0.0
        %584 = vmatpush1.msra.mxu0 0.0
        %585 = vmatprep.subr.mxu0 0.0
        %586 = vmatpush1.msra.mxu0 0.0
        %587 = vmatprep.subr.mxu0 0.0
        %588 = vmatpush1.msra.mxu0 0.0
        %589 = vmatprep.subr.mxu0 0.0
        %590 = vmatpush1.msra.mxu0 0.0
        %591 = vmatprep.mubr.f32.mxu0 0.0
        %592 = vmatmul.mubr.f32.gmra.mrb[0].mxu0 %v525
        %v593 = vpop.f32.mrb[0].mxu0
        %v594 = vadd.f32 0.0, %v593
        %v595 = vpop.f32.mrb[0].mxu0
        %v596 = vadd.f32 0.0, %v595
        %597 = vdwg.mxu0
        %v598 = vld [vmem:[%s6] sm:$0xff]
        %600 = vset.pattern.permute.xlu0 0
        %601 = vperm.xlu0 %600, %v598
        %v602 = vpop.permute.xlu0 %601
        %v604 = vmul.f32 %v594, %v602
        %v605 = vmul.f32 %v596, %v602
        %v606 = vld [vmem:[%s7] sm:$0xff]
        %608 = vset.pattern.permute.xlu0 0
        %609 = vperm.xlu0 %608, %v606
        %v610 = vpop.permute.xlu0 %609
        %v612 = vadd.f32 %v604, %v610
        %v613 = vadd.f32 %v605, %v610
        %615 = vset.pattern.permute.xlu0 0
        %616 = vperm.xlu0 %615, %v503
        %v617 = vpop.permute.xlu0 %616
        %v619 = vmul.f32 %v612, %v617
        %v620 = vmul.f32 %v613, %v617
        %v621 = vld [vmem:[%s9] sm:$0xff]
        %v622 = vld [vmem:[%s434] sm:$0xff]
        %v623 = vld [vmem:[%s434 + $0x8] sm:$0xff]
        %v624 = vld [vmem:[%s434 + $0x10] sm:$0xff]
        %v625 = vld [vmem:[%s434 + $0x18] sm:$0xff]
        %v626 = vld [vmem:[%s434 + $0x20] sm:$0xff]
        %v627 = vld [vmem:[%s434 + $0x28] sm:$0xff]
        %v628 = vld [vmem:[%s434 + $0x30] sm:$0xff]
        %v629 = vld [vmem:[%s434 + $0x38] sm:$0xff]
        %vm630 = vcmask 523264
        %v632 = vsel %vm630, %v621, 0
        %634 = vmatprep.subr.mxu0 0.0
        %635 = vmatpush1.msra.mxu0 %v622
        %636 = vmatprep.subr.mxu0 0.0
        %637 = vmatpush1.msra.mxu0 %v623
        %638 = vmatprep.subr.mxu0 0.0
        %639 = vmatpush1.msra.mxu0 %v624
        %640 = vmatprep.subr.mxu0 0.0
        %641 = vmatpush1.msra.mxu0 %v625
        %642 = vmatprep.subr.mxu0 0.0
        %643 = vmatpush1.msra.mxu0 %v626
        %644 = vmatprep.subr.mxu0 0.0
        %645 = vmatpush1.msra.mxu0 %v627
        %646 = vmatprep.subr.mxu0 0.0
        %647 = vmatpush1.msra.mxu0 %v628
        %648 = vmatprep.subr.mxu0 0.0
        %649 = vmatpush1.msra.mxu0 %v629
        %650 = vmatprep.subr.mxu0 0.0
        %651 = vmatpush1.msra.mxu0 0.0
        %652 = vmatprep.subr.mxu0 0.0
        %653 = vmatpush1.msra.mxu0 0.0
        %654 = vmatprep.subr.mxu0 0.0
        %655 = vmatpush1.msra.mxu0 0.0
        %656 = vmatprep.subr.mxu0 0.0
        %657 = vmatpush1.msra.mxu0 0.0
        %658 = vmatprep.subr.mxu0 0.0
        %659 = vmatpush1.msra.mxu0 0.0
        %660 = vmatprep.subr.mxu0 0.0
        %661 = vmatpush1.msra.mxu0 0.0
        %662 = vmatprep.subr.mxu0 0.0
        %663 = vmatpush1.msra.mxu0 0.0
        %664 = vmatprep.subr.mxu0 0.0
        %665 = vmatpush1.msra.mxu0 0.0
        %666 = vmatprep.subr.mxu0 0.0
        %667 = vmatpush1.msra.mxu0 0.0
        %668 = vmatprep.subr.mxu0 0.0
        %669 = vmatpush1.msra.mxu0 0.0
        %670 = vmatprep.subr.mxu0 0.0
        %671 = vmatpush1.msra.mxu0 0.0
        %672 = vmatprep.subr.mxu0 0.0
        %673 = vmatpush1.msra.mxu0 0.0
        %674 = vmatprep.subr.mxu0 0.0
        %675 = vmatpush1.msra.mxu0 0.0
        %676 = vmatprep.subr.mxu0 0.0
        %677 = vmatpush1.msra.mxu0 0.0
        %678 = vmatprep.subr.mxu0 0.0
        %679 = vmatpush1.msra.mxu0 0.0
        %680 = vmatprep.subr.mxu0 0.0
        %681 = vmatpush1.msra.mxu0 0.0
        %682 = vmatprep.subr.mxu0 0.0
        %683 = vmatpush1.msra.mxu0 0.0
        %684 = vmatprep.subr.mxu0 0.0
        %685 = vmatpush1.msra.mxu0 0.0
        %686 = vmatprep.subr.mxu0 0.0
        %687 = vmatpush1.msra.mxu0 0.0
        %688 = vmatprep.subr.mxu0 0.0
        %689 = vmatpush1.msra.mxu0 0.0
        %690 = vmatprep.subr.mxu0 0.0
        %691 = vmatpush1.msra.mxu0 0.0
        %692 = vmatprep.subr.mxu0 0.0
        %693 = vmatpush1.msra.mxu0 0.0
        %694 = vmatprep.subr.mxu0 0.0
        %695 = vmatpush1.msra.mxu0 0.0
        %696 = vmatprep.subr.mxu0 0.0
        %697 = vmatpush1.msra.mxu0 0.0
        %698 = vmatprep.mubr.f32.mxu0 0.0
        %699 = vmatmul.mubr.f32.gmra.mrb[0].mxu0 %v632
        %v700 = vpop.f32.mrb[0].mxu0
        %v701 = vadd.f32 0.0, %v700
        %v702 = vpop.f32.mrb[0].mxu0
        %703 = vdwg.mxu0
        %s704 = scalar_lea.vmem %s9, 8
        %v705 = vld [vmem:[%s704] sm:$0xff]
        %s706 = scalar_lea.vmem %s434, 64 [#allocation5]
        %v707 = vld [vmem:[%s706] sm:$0xff]
        %v708 = vld [vmem:[%s706 + $0x8] sm:$0xff]
        %v709 = vld [vmem:[%s706 + $0x10] sm:$0xff]
        %v710 = vld [vmem:[%s706 + $0x18] sm:$0xff]
        %v711 = vld [vmem:[%s706 + $0x20] sm:$0xff]
        %v712 = vld [vmem:[%s706 + $0x28] sm:$0xff]
        %v713 = vld [vmem:[%s706 + $0x30] sm:$0xff]
        %v714 = vld [vmem:[%s706 + $0x38] sm:$0xff]
        %v716 = vsel %vm630, %v705, 0
        %718 = vmatprep.subr.mxu0 0.0
        %719 = vmatpush1.msra.mxu0 %v707
        %720 = vmatprep.subr.mxu0 0.0
        %721 = vmatpush1.msra.mxu0 %v708
        %722 = vmatprep.subr.mxu0 0.0
        %723 = vmatpush1.msra.mxu0 %v709
        %724 = vmatprep.subr.mxu0 0.0
        %725 = vmatpush1.msra.mxu0 %v710
        %726 = vmatprep.subr.mxu0 0.0
        %727 = vmatpush1.msra.mxu0 %v711
        %728 = vmatprep.subr.mxu0 0.0
        %729 = vmatpush1.msra.mxu0 %v712
        %730 = vmatprep.subr.mxu0 0.0
        %731 = vmatpush1.msra.mxu0 %v713
        %732 = vmatprep.subr.mxu0 0.0
        %733 = vmatpush1.msra.mxu0 %v714
        %734 = vmatprep.subr.mxu0 0.0
        %735 = vmatpush1.msra.mxu0 0.0
        %736 = vmatprep.subr.mxu0 0.0
        %737 = vmatpush1.msra.mxu0 0.0
        %738 = vmatprep.subr.mxu0 0.0
        %739 = vmatpush1.msra.mxu0 0.0
        %740 = vmatprep.subr.mxu0 0.0
        %741 = vmatpush1.msra.mxu0 0.0
        %742 = vmatprep.subr.mxu0 0.0
        %743 = vmatpush1.msra.mxu0 0.0
        %744 = vmatprep.subr.mxu0 0.0
        %745 = vmatpush1.msra.mxu0 0.0
        %746 = vmatprep.subr.mxu0 0.0
        %747 = vmatpush1.msra.mxu0 0.0
        %748 = vmatprep.subr.mxu0 0.0
        %749 = vmatpush1.msra.mxu0 0.0
        %750 = vmatprep.subr.mxu0 0.0
        %751 = vmatpush1.msra.mxu0 0.0
        %752 = vmatprep.subr.mxu0 0.0
        %753 = vmatpush1.msra.mxu0 0.0
        %754 = vmatprep.subr.mxu0 0.0
        %755 = vmatpush1.msra.mxu0 0.0
        %756 = vmatprep.subr.mxu0 0.0
        %757 = vmatpush1.msra.mxu0 0.0
        %758 = vmatprep.subr.mxu0 0.0
        %759 = vmatpush1.msra.mxu0 0.0
        %760 = vmatprep.subr.mxu0 0.0
        %761 = vmatpush1.msra.mxu0 0.0
        %762 = vmatprep.subr.mxu0 0.0
        %763 = vmatpush1.msra.mxu0 0.0
        %764 = vmatprep.subr.mxu0 0.0
        %765 = vmatpush1.msra.mxu0 0.0
        %766 = vmatprep.subr.mxu0 0.0
        %767 = vmatpush1.msra.mxu0 0.0
        %768 = vmatprep.subr.mxu0 0.0
        %769 = vmatpush1.msra.mxu0 0.0
        %770 = vmatprep.subr.mxu0 0.0
        %771 = vmatpush1.msra.mxu0 0.0
        %772 = vmatprep.subr.mxu0 0.0
        %773 = vmatpush1.msra.mxu0 0.0
        %774 = vmatprep.subr.mxu0 0.0
        %775 = vmatpush1.msra.mxu0 0.0
        %776 = vmatprep.subr.mxu0 0.0
        %777 = vmatpush1.msra.mxu0 0.0
        %778 = vmatprep.subr.mxu0 0.0
        %779 = vmatpush1.msra.mxu0 0.0
        %780 = vmatprep.subr.mxu0 0.0
        %781 = vmatpush1.msra.mxu0 0.0
        %782 = vmatprep.mubr.f32.mxu0 0.0
        %783 = vmatmul.mubr.f32.gmra.mrb[0].mxu0 %v716
        %v784 = vpop.f32.mrb[0].mxu0
        %v785 = vadd.f32 0.0, %v784
        %v786 = vpop.f32.mrb[0].mxu0
        %787 = vdwg.mxu0
        %s788 = scalar_lea.vmem %s9, 16
        %v789 = vld [vmem:[%s788] sm:$0xff]
        %s790 = scalar_lea.vmem %s434, 128 [#allocation5]
        %v791 = vld [vmem:[%s790] sm:$0xff]
        %v792 = vld [vmem:[%s790 + $0x8] sm:$0xff]
        %v793 = vld [vmem:[%s790 + $0x10] sm:$0xff]
        %v794 = vld [vmem:[%s790 + $0x18] sm:$0xff]
        %v795 = vld [vmem:[%s790 + $0x20] sm:$0xff]
        %v796 = vld [vmem:[%s790 + $0x28] sm:$0xff]
        %v797 = vld [vmem:[%s790 + $0x30] sm:$0xff]
        %v798 = vld [vmem:[%s790 + $0x38] sm:$0xff]
        %v800 = vsel %vm630, %v789, 0
        %802 = vmatprep.subr.mxu0 0.0
        %803 = vmatpush1.msra.mxu0 %v791
        %804 = vmatprep.subr.mxu0 0.0
        %805 = vmatpush1.msra.mxu0 %v792
        %806 = vmatprep.subr.mxu0 0.0
        %807 = vmatpush1.msra.mxu0 %v793
        %808 = vmatprep.subr.mxu0 0.0
        %809 = vmatpush1.msra.mxu0 %v794
        %810 = vmatprep.subr.mxu0 0.0
        %811 = vmatpush1.msra.mxu0 %v795
        %812 = vmatprep.subr.mxu0 0.0
        %813 = vmatpush1.msra.mxu0 %v796
        %814 = vmatprep.subr.mxu0 0.0
        %815 = vmatpush1.msra.mxu0 %v797
        %816 = vmatprep.subr.mxu0 0.0
        %817 = vmatpush1.msra.mxu0 %v798
        %818 = vmatprep.subr.mxu0 0.0
        %819 = vmatpush1.msra.mxu0 0.0
        %820 = vmatprep.subr.mxu0 0.0
        %821 = vmatpush1.msra.mxu0 0.0
        %822 = vmatprep.subr.mxu0 0.0
        %823 = vmatpush1.msra.mxu0 0.0
        %824 = vmatprep.subr.mxu0 0.0
        %825 = vmatpush1.msra.mxu0 0.0
        %826 = vmatprep.subr.mxu0 0.0
        %827 = vmatpush1.msra.mxu0 0.0
        %828 = vmatprep.subr.mxu0 0.0
        %829 = vmatpush1.msra.mxu0 0.0
        %830 = vmatprep.subr.mxu0 0.0
        %831 = vmatpush1.msra.mxu0 0.0
        %832 = vmatprep.subr.mxu0 0.0
        %833 = vmatpush1.msra.mxu0 0.0
        %834 = vmatprep.subr.mxu0 0.0
        %835 = vmatpush1.msra.mxu0 0.0
        %836 = vmatprep.subr.mxu0 0.0
        %837 = vmatpush1.msra.mxu0 0.0
        %838 = vmatprep.subr.mxu0 0.0
        %839 = vmatpush1.msra.mxu0 0.0
        %840 = vmatprep.subr.mxu0 0.0
        %841 = vmatpush1.msra.mxu0 0.0
        %842 = vmatprep.subr.mxu0 0.0
        %843 = vmatpush1.msra.mxu0 0.0
        %844 = vmatprep.subr.mxu0 0.0
        %845 = vmatpush1.msra.mxu0 0.0
        %846 = vmatprep.subr.mxu0 0.0
        %847 = vmatpush1.msra.mxu0 0.0
        %848 = vmatprep.subr.mxu0 0.0
        %849 = vmatpush1.msra.mxu0 0.0
        %850 = vmatprep.subr.mxu0 0.0
        %851 = vmatpush1.msra.mxu0 0.0
        %852 = vmatprep.subr.mxu0 0.0
        %853 = vmatpush1.msra.mxu0 0.0
        %854 = vmatprep.subr.mxu0 0.0
        %855 = vmatpush1.msra.mxu0 0.0
        %856 = vmatprep.subr.mxu0 0.0
        %857 = vmatpush1.msra.mxu0 0.0
        %858 = vmatprep.subr.mxu0 0.0
        %859 = vmatpush1.msra.mxu0 0.0
        %860 = vmatprep.subr.mxu0 0.0
        %861 = vmatpush1.msra.mxu0 0.0
        %862 = vmatprep.subr.mxu0 0.0
        %863 = vmatpush1.msra.mxu0 0.0
        %864 = vmatprep.subr.mxu0 0.0
        %865 = vmatpush1.msra.mxu0 0.0
        %866 = vmatprep.mubr.f32.mxu0 0.0
        %867 = vmatmul.mubr.f32.gmra.mrb[0].mxu0 %v800
        %v868 = vpop.f32.mrb[0].mxu0
        %v869 = vadd.f32 0.0, %v868
        %v870 = vpop.f32.mrb[0].mxu0
        %871 = vdwg.mxu0
        %s872 = scalar_lea.vmem %s9, 24
        %v873 = vld [vmem:[%s872] sm:$0xff]
        %s874 = scalar_lea.vmem %s434, 192 [#allocation5]
        %v875 = vld [vmem:[%s874] sm:$0xff]
        %v876 = vld [vmem:[%s874 + $0x8] sm:$0xff]
        %v877 = vld [vmem:[%s874 + $0x10] sm:$0xff]
        %v878 = vld [vmem:[%s874 + $0x18] sm:$0xff]
        %v879 = vld [vmem:[%s874 + $0x20] sm:$0xff]
        %v880 = vld [vmem:[%s874 + $0x28] sm:$0xff]
        %v881 = vld [vmem:[%s874 + $0x30] sm:$0xff]
        %v882 = vld [vmem:[%s874 + $0x38] sm:$0xff]
        %v884 = vsel %vm630, %v873, 0
        %886 = vmatprep.subr.mxu0 0.0
        %887 = vmatpush1.msra.mxu0 %v875
        %888 = vmatprep.subr.mxu0 0.0
        %889 = vmatpush1.msra.mxu0 %v876
        %890 = vmatprep.subr.mxu0 0.0
        %891 = vmatpush1.msra.mxu0 %v877
        %892 = vmatprep.subr.mxu0 0.0
        %893 = vmatpush1.msra.mxu0 %v878
        %894 = vmatprep.subr.mxu0 0.0
        %895 = vmatpush1.msra.mxu0 %v879
        %896 = vmatprep.subr.mxu0 0.0
        %897 = vmatpush1.msra.mxu0 %v880
        %898 = vmatprep.subr.mxu0 0.0
        %899 = vmatpush1.msra.mxu0 %v881
        %900 = vmatprep.subr.mxu0 0.0
        %901 = vmatpush1.msra.mxu0 %v882
        %902 = vmatprep.subr.mxu0 0.0
        %903 = vmatpush1.msra.mxu0 0.0
        %904 = vmatprep.subr.mxu0 0.0
        %905 = vmatpush1.msra.mxu0 0.0
        %906 = vmatprep.subr.mxu0 0.0
        %907 = vmatpush1.msra.mxu0 0.0
        %908 = vmatprep.subr.mxu0 0.0
        %909 = vmatpush1.msra.mxu0 0.0
        %910 = vmatprep.subr.mxu0 0.0
        %911 = vmatpush1.msra.mxu0 0.0
        %912 = vmatprep.subr.mxu0 0.0
        %913 = vmatpush1.msra.mxu0 0.0
        %914 = vmatprep.subr.mxu0 0.0
        %915 = vmatpush1.msra.mxu0 0.0
        %916 = vmatprep.subr.mxu0 0.0
        %917 = vmatpush1.msra.mxu0 0.0
        %918 = vmatprep.subr.mxu0 0.0
        %919 = vmatpush1.msra.mxu0 0.0
        %920 = vmatprep.subr.mxu0 0.0
        %921 = vmatpush1.msra.mxu0 0.0
        %922 = vmatprep.subr.mxu0 0.0
        %923 = vmatpush1.msra.mxu0 0.0
        %924 = vmatprep.subr.mxu0 0.0
        %925 = vmatpush1.msra.mxu0 0.0
        %926 = vmatprep.subr.mxu0 0.0
        %927 = vmatpush1.msra.mxu0 0.0
        %928 = vmatprep.subr.mxu0 0.0
        %929 = vmatpush1.msra.mxu0 0.0
        %930 = vmatprep.subr.mxu0 0.0
        %931 = vmatpush1.msra.mxu0 0.0
        %932 = vmatprep.subr.mxu0 0.0
        %933 = vmatpush1.msra.mxu0 0.0
        %934 = vmatprep.subr.mxu0 0.0
        %935 = vmatpush1.msra.mxu0 0.0
        %936 = vmatprep.subr.mxu0 0.0
        %937 = vmatpush1.msra.mxu0 0.0
        %938 = vmatprep.subr.mxu0 0.0
        %939 = vmatpush1.msra.mxu0 0.0
        %940 = vmatprep.subr.mxu0 0.0
        %941 = vmatpush1.msra.mxu0 0.0
        %942 = vmatprep.subr.mxu0 0.0
        %943 = vmatpush1.msra.mxu0 0.0
        %944 = vmatprep.subr.mxu0 0.0
        %945 = vmatpush1.msra.mxu0 0.0
        %946 = vmatprep.subr.mxu0 0.0
        %947 = vmatpush1.msra.mxu0 0.0
        %948 = vmatprep.subr.mxu0 0.0
        %949 = vmatpush1.msra.mxu0 0.0
        %950 = vmatprep.mubr.f32.mxu0 0.0
        %951 = vmatmul.mubr.f32.gmra.mrb[0].mxu0 %v884
        %v952 = vpop.f32.mrb[0].mxu0
        %v953 = vadd.f32 0.0, %v952
        %v954 = vpop.f32.mrb[0].mxu0
        %955 = vdwg.mxu0
        %957 = vrot.lane.b32.xlu0 %v785, 64
        %v958 = vpop.permute.xlu0 %957
        %961 = vrot.lane.b32.xlu0 %v953, 64
        %v962 = vpop.permute.xlu0 %961
        %v964 = vsel %vm630, %v701, %v958
        %v965 = vsel %vm630, %v869, %v962
        %v966 = vld [vmem:[%s10] sm:$0xff]
        %968 = vset.pattern.permute.xlu0 0
        %969 = vperm.xlu0 %968, %v966
        %v970 = vpop.permute.xlu0 %969
        %v972 = vmul.f32 %v964, %v970
        %v973 = vmul.f32 %v965, %v970
        %v974 = vld [vmem:[%s11] sm:$0xff]
        %976 = vset.pattern.permute.xlu0 0
        %977 = vperm.xlu0 %976, %v974
        %v978 = vpop.permute.xlu0 %977
        %v980 = vadd.f32 %v972, %v978
        %v981 = vadd.f32 %v973, %v978
        %v982 = vadd.f32 %v980, %v619
        %v983 = vadd.f32 %v981, %v620
        %v984 = vmax.f32 %v982, 0.0
        %v985 = vmax.f32 %v983, 0.0
        %986 = vst [vmem:[%s482] sm:$0xff] %v984
        %987 = vst [vmem:[%s482 + $0x8] sm:$0xff] %v985
        %s988 = sand.u32 %s307, 1
        %s989 = scalar_lea.sflag [#allocation4], %s988
        %s990 = sand.u32 %s307, 1
        %s991 = smul.addr %s990, 16
        %s992 = scalar_lea.vmem [#allocation7], %s991
        // Predicated region
        $region77: #{tpu_custom_call.1} parent=67 // pred_check
          %p993 = pneg %p317
        $region78: #{tpu_custom_call.1} parent=67 // pred_check_branch
          %995 = sbr.rel (%p993) target = $region80
        $region79: #{tpu_custom_call.1} parent=67 // pred_region
          %s997 = ssub.s32 256, 256
          %998 = vsyncadd %s989, %s997
          %s999 = smul.addr %s32, 2
          %s1000 = smul.addr %s999, 128
          %s1001 = scalar_lea.hbm %s12, %s1000
          %s1003 = sshll.u32 %s992, 4
          %s1004 = int_to_ptr.vmem [resolvable:$true] %s1003
          %1006 = dma.vmem_to_hbm [thread:$0]  %s1004, 256, %s1001, %s989
        $region80: #{tpu_custom_call.1} parent=67 // pred_fallthru
          _
      $region68: #{tpu_custom_call.1} parent=5 // pred_fallthru
        _
      %p1007 = scmp.le.s32.totalorder 2, %s27
      // Predicated region
      $region81: #{tpu_custom_call.1} parent=5 // pred_check
        %p1008 = pneg %p1007
      $region82: #{tpu_custom_call.1} parent=5 // pred_check_branch
        %1010 = sbr.rel (%p1008) target = $region84
      $region83: #{tpu_custom_call.1} parent=5 // pred_region
        %s1011 = ssub.s32 %s27, 2
        // Predicated region
        $region85: #{tpu_custom_call.1} parent=83 // pred_check
          %p1012 = pneg %p323
        $region86: #{tpu_custom_call.1} parent=83 // pred_check_branch
          %1014 = sbr.rel (%p1012) target = $region88
        $region87: #{tpu_custom_call.1} parent=83 // pred_region
          %s1015 = sand.u32 %s308, 1
          %s1016 = scalar_lea.sflag [#allocation4], %s1015
          %s1017 = sand.u32 %s308, 1
          %s1018 = smul.addr %s1017, 16
          %s1019 = scalar_lea.vmem [#allocation7], %s1018
          %1020 = dma.done %s1016, 256
        $region88: #{tpu_custom_call.1} parent=83 // pred_fallthru
          _
      $region84: #{tpu_custom_call.1} parent=5 // pred_fallthru
        _
    $region6: #{tpu_custom_call.1} parent=1 // loop_footer
      %s31 = sadd.s32 1, %s27
    $region7: #{tpu_custom_call.1} parent=1 // loop_footer_branch
      %26 = sbr.rel target = $region3
    $region8: #{tpu_custom_call.1} parent=1 // loop_exit
      _
    %1021 = vsyncpa [#allocation3], 1
    %s1022 = scalar_lea.sflag [#allocation3], 1
    %1023 = vsyncpa %s1022, 1
    %1024 = vsyncpa [#allocation6], 1
    %s1025 = scalar_lea.sflag [#allocation6], 1
    %1026 = vsyncpa %s1025, 1
    %1027 = vsyncpa [#allocation4], 1
    %s1028 = scalar_lea.sflag [#allocation4], 1
    %1029 = vsyncpa %s1028, 1

</llo_original>
